<compile_context>
chip_gen: v5e
topology: v5e:2x2
jax: 0.10.0
libtpu: 0.0.40
codegen_flags: <defaults>
</compile_context>

<pallas_src>
import functools

import jax
import jax.numpy as jnp
import numpy as np
from jax.experimental import pallas as pl
from jax.experimental.pallas import tpu as pltpu

LN_EPS = 1e-5  # PyTorch nn.LayerNorm default


def _round_up(v, m):
    return (v + m - 1) // m * m


# ----------------------------------------------------------------------------
# Pass 1: attention spatial pooling (softmax over H*W), streamed over S tiles.
# ----------------------------------------------------------------------------
def _context_kernel(y_ref, wm_ref, bmask_ref, ctx_ref, m_sc, l_sc,
                    *, s_actual, s_tile):
    s_idx = pl.program_id(1)

    @pl.when(s_idx == 0)
    def _():
        m_sc[...] = jnp.full_like(m_sc, -jnp.inf)
        l_sc[...] = jnp.zeros_like(l_sc)
        ctx_ref[...] = jnp.zeros_like(ctx_ref)

    y = y_ref[0]                                            # (C, S_TILE)

    # conv_mask logits for this spatial tile: (1,C)@(C,S_TILE) on the MXU.
    logits = jnp.dot(wm_ref[...], y, preferred_element_type=jnp.float32)
    logits = logits + bmask_ref[0, 0]                       # scalar from SMEM

    if s_actual % s_tile != 0:                              # static: padding exists
        lane = (jax.lax.broadcasted_iota(jnp.int32, logits.shape, 1)
                + s_idx * s_tile)
        logits = jnp.where(lane < s_actual, logits, -jnp.inf)

    # Online softmax update.
    m_prev = m_sc[...]                                      # (1, 1)
    m_new = jnp.maximum(m_prev, jnp.max(logits, axis=1, keepdims=True))
    alpha = jnp.exp(m_prev - m_new)                         # rescale old accum
    e = jnp.exp(logits - m_new)                             # (1, S_TILE)

    l_sc[...] = l_sc[...] * alpha + jnp.sum(e, axis=1, keepdims=True)
    # Unnormalized context contribution: (C,S_TILE) x (1,S_TILE) -> (C,1), MXU.
    contrib = jax.lax.dot_general(y, e, (((1,), (1,)), ((), ())),
                                  preferred_element_type=jnp.float32)
    ctx_ref[0] = ctx_ref[0] * alpha + contrib
    m_sc[...] = m_new

    @pl.when(s_idx == pl.num_programs(1) - 1)
    def _():
        # Deferred softmax normalization: one exact (C,1) multiply.
        ctx_ref[0] = ctx_ref[0] * pl.reciprocal(l_sc[...])


# ----------------------------------------------------------------------------
# Pass 2: both channel branches (Conv1x1 -> LayerNorm -> ReLU -> Conv1x1),
#         batched over B so all contractions are real MXU matmuls.
# ----------------------------------------------------------------------------
def _terms_kernel(ctx_ref, w1_ref, ln_ref, w2t_ref, b2_ref, t_ref, *, mid):
    ctx = ctx_ref[...]                                      # (B, C)
    # Both branches' first 1x1 conv in one batched dot: (B,C)@(C,2*mid).
    h = jnp.dot(ctx, w1_ref[...], preferred_element_type=jnp.float32)
    ln = ln_ref[...]                                        # (6, mid)
    w2t = w2t_ref[...]                                      # (2, mid, C)
    b2 = b2_ref[...]                                        # (2, C)

    def branch(hh, b1, g, bt, w2, bb):
        hh = hh + b1                                        # (B, mid)
        mu = jnp.mean(hh, axis=-1, keepdims=True)
        var = jnp.mean((hh - mu) ** 2, axis=-1, keepdims=True)
        hn = (hh - mu) * jax.lax.rsqrt(var + LN_EPS) * g + bt
        hr = jnp.maximum(hn, 0.0)
        return jnp.dot(hr, w2, preferred_element_type=jnp.float32) + bb  # (B,C)

    t_add = branch(h[:, :mid], ln[0:1], ln[1:2], ln[2:3], w2t[0], b2[0:1])
    t_mul = branch(h[:, mid:], ln[3:4], ln[4:5], ln[5:6], w2t[1], b2[1:2])
    # Layout: [:, :C] = sigmoid(channel_mul_term), [:, C:] = channel_add_term.
    t_ref[...] = jnp.concatenate([jax.nn.sigmoid(t_mul), t_add], axis=-1)


# ----------------------------------------------------------------------------
# Pass 3: elementwise apply, streamed over spatial tiles (fully parallel).
# ----------------------------------------------------------------------------
def _apply_kernel(x_ref, t_ref, o_ref, *, c):
    t = t_ref[0]                       # (2*C, 1)
    sig = t[:c]                        # sigmoid(channel_mul_term), (C, 1)
    add = t[c:]                        # channel_add_term,          (C, 1)
    o_ref[0] = (x_ref[0] * sig + add).astype(o_ref.dtype)


# ----------------------------------------------------------------------------
# Wrapper
# ----------------------------------------------------------------------------
def dpg_head(x, y, params):
    B, C, H, W = x.shape
    S = H * W
    mid = params['w1_add_t'].shape[1]

    # Spatial tiling: lane-dense (>=128) tiles, (C, S_TILE) f32 block <= ~8 MiB.
    s128 = _round_up(S, 128)
    max_lanes = max(128, min(2048, ((8 * 1024 * 1024) // (4 * C)) // 128 * 128))
    S_TILE = min(s128, max_lanes)
    S_pad = _round_up(S, S_TILE)
    nS = S_pad // S_TILE

    x2 = x.reshape(B, C, S)
    y2 = y.reshape(B, C, S)
    if S_pad != S:
        pad = ((0, 0), (0, 0), (0, S_pad - S))
        x2 = jnp.pad(x2, pad)
        y2 = jnp.pad(y2, pad)

    p = params
    wm_row = p['w_mask'].reshape(1, C).astype(jnp.float32)              # (1, C)
    b_mask = p['b_mask'].reshape(1, 1).astype(jnp.float32)              # (1, 1)  -> SMEM
    # Consolidated branch params (order: add first, mul second).
    w1_cat = jnp.concatenate([p['w1_add_t'], p['w1_mul_t']], axis=1)    # (C, 2*mid)
    ln_cat = jnp.concatenate([p['b1_add'], p['g_add'], p['beta_add'],
                              p['b1_mul'], p['g_mul'], p['beta_mul']],
                             axis=0)                                    # (6, mid)
    w2t_cat = jnp.stack([p['w2_add'].T, p['w2_mul'].T], axis=0)         # (2, mid, C)
    b2_cat = jnp.concatenate([p['b2_add'].T, p['b2_mul'].T], axis=0)    # (2, C)

    # ---- Pass 1: per-batch attention-pooled context (B, C, 1) ----
    ctx = pl.pallas_call(
        functools.partial(_context_kernel, s_actual=S, s_tile=S_TILE),
        out_shape=jax.ShapeDtypeStruct((B, C, 1), jnp.float32),
        grid_spec=pltpu.PrefetchScalarGridSpec(
            num_scalar_prefetch=0,
            grid=(B, nS),
            in_specs=[
                pl.BlockSpec((1, C, S_TILE), lambda b, s: (b, 0, s)),
                pl.BlockSpec((1, C), lambda b, s: (0, 0)),
                pl.BlockSpec(memory_space=pltpu.MemorySpace.SMEM),
            ],
            out_specs=pl.BlockSpec((1, C, 1), lambda b, s: (b, 0, 0)),
            scratch_shapes=[pltpu.VMEM((1, 1), jnp.float32),   # running max
                            pltpu.VMEM((1, 1), jnp.float32)],  # running denom
        ),
        compiler_params=pltpu.CompilerParams(
            dimension_semantics=("parallel", "arbitrary"),
            vmem_limit_bytes=64 * 1024 * 1024),
    )(y2, wm_row, b_mask)

    # ---- Pass 2: channel_add / channel_mul terms for all B at once ----
    terms = pl.pallas_call(
        functools.partial(_terms_kernel, mid=mid),
        out_shape=jax.ShapeDtypeStruct((B, 2 * C), jnp.float32),
        grid_spec=pltpu.PrefetchScalarGridSpec(
            num_scalar_prefetch=0,
            grid=(1,),
            in_specs=[
                pl.BlockSpec((B, C), lambda i: (0, 0)),
                pl.BlockSpec((C, 2 * mid), lambda i: (0, 0)),
                pl.BlockSpec((6, mid), lambda i: (0, 0)),
                pl.BlockSpec((2, mid, C), lambda i: (0, 0, 0)),
                pl.BlockSpec((2, C), lambda i: (0, 0)),
            ],
            out_specs=pl.BlockSpec((B, 2 * C), lambda i: (0, 0)),
        ),
        compiler_params=pltpu.CompilerParams(
            dimension_semantics=("arbitrary",)),
    )(ctx[:, :, 0], w1_cat, ln_cat, w2t_cat, b2_cat)

    # Tiny reorientation so the apply kernel broadcasts (C,1) along lanes.
    t3 = terms.reshape(B, 2 * C, 1)

    # ---- Pass 3: out = x * sigmoid(mul_term) + add_term ----
    out = pl.pallas_call(
        functools.partial(_apply_kernel, c=C),
        out_shape=jax.ShapeDtypeStruct((B, C, S_pad), x.dtype),
        grid_spec=pltpu.PrefetchScalarGridSpec(
            num_scalar_prefetch=0,
            grid=(B, nS),
            in_specs=[
                pl.BlockSpec((1, C, S_TILE), lambda b, s: (b, 0, s)),
                pl.BlockSpec((1, 2 * C, 1), lambda b, s: (b, 0, 0)),
            ],
            out_specs=pl.BlockSpec((1, C, S_TILE), lambda b, s: (b, 0, s)),
        ),
        compiler_params=pltpu.CompilerParams(
            dimension_semantics=("parallel", "parallel"),
            vmem_limit_bytes=64 * 1024 * 1024),
    )(x2, t3)

    if S_pad != S:
        out = out[:, :, :S]
    return out.reshape(B, C, H, W)


# ----------------------------------------------------------------------------
# Deterministic parameter init (shapes dictated by DPGHead.__init__)
# ----------------------------------------------------------------------------
def init_params(key, in_ch, mid_ch):
    ks = jax.random.split(key, 10)

    def rn(k, shape, scale):
        return (scale * jax.random.normal(k, shape)).astype(jnp.float32)

    params = {
        # conv_mask: nn.Conv2d(in_ch, 1, 1): weight (1, C, 1, 1) stored as (C, 1)
        'w_mask': rn(ks[0], (in_ch, 1), 1.0 / np.sqrt(in_ch)),
        'b_mask': rn(ks[1], (1, 1), 0.1),
        # channel_add branch
        'w1_add_t': rn(ks[2], (in_ch, mid_ch), 1.0 / np.sqrt(in_ch)),  # conv1 weight^T
        'b1_add': rn(ks[3], (1, mid_ch), 0.1),
        'g_add': jnp.ones((1, mid_ch), jnp.float32),                   # LayerNorm gamma
        'beta_add': jnp.zeros((1, mid_ch), jnp.float32),               # LayerNorm beta
        'w2_add': rn(ks[4], (in_ch, mid_ch), 1.0 / np.sqrt(mid_ch)),   # conv2 weight
        'b2_add': rn(ks[5], (in_ch, 1), 0.1),
        # channel_mul branch
        'w1_mul_t': rn(ks[6], (in_ch, mid_ch), 1.0 / np.sqrt(in_ch)),
        'b1_mul': rn(ks[7], (1, mid_ch), 0.1),
        'g_mul': jnp.ones((1, mid_ch), jnp.float32),
        'beta_mul': jnp.zeros((1, mid_ch), jnp.float32),
        'w2_mul': rn(ks[8], (in_ch, mid_ch), 1.0 / np.sqrt(mid_ch)),
        'b2_mul': rn(ks[9], (in_ch, 1), 0.1),
    }
    return params


# ----------------------------------------------------------------------------
# Pure-JAX reference (mirrors the PyTorch forward exactly)
# ----------------------------------------------------------------------------
def dpg_head_reference(x, y, p):
    B, C, H, W = x.shape
    S = H * W
    yf = y.reshape(B, C, S)

    wm = p['w_mask'][:, 0]                                    # (C,)
    logits = jnp.einsum('bcs,c->bs', yf, wm) + p['b_mask'][0, 0]
    attn = jax.nn.softmax(logits, axis=-1)                    # softmax over H*W
    context = jnp.einsum('bcs,bs->bc', yf, attn)              # (B, C)

    def branch(ctx, w1t, b1, g, bt, w2, b2):
        h = ctx @ w1t + b1[0]                                 # (B, mid)
        mu = h.mean(-1, keepdims=True)
        var = ((h - mu) ** 2).mean(-1, keepdims=True)
        hn = (h - mu) / jnp.sqrt(var + LN_EPS) * g[0] + bt[0]
        hr = jnp.maximum(hn, 0.0)
        return hr @ w2.T + b2[:, 0]                           # (B, C)

    t_mul = branch(context, p['w1_mul_t'], p['b1_mul'], p['g_mul'],
                   p['beta_mul'], p['w2_mul'], p['b2_mul'])
    t_add = branch(context, p['w1_add_t'], p['b1_add'], p['g_add'],
                   p['beta_add'], p['w2_add'], p['b2_add'])
    return x * jax.nn.sigmoid(t_mul)[:, :, None, None] + t_add[:, :, None, None]


if __name__ == "__main__":
    B, in_ch, mid_ch, H, W = 2, 4, 8, 16, 16

    key = jax.random.PRNGKey(0)
    kx, ky, kp = jax.random.split(key, 3)
    x = jax.random.normal(kx, (B, in_ch, H, W), jnp.float32)
    y = jax.random.normal(ky, (B, in_ch, H, W), jnp.float32)
    params = init_params(kp, in_ch, mid_ch)

    out = dpg_head(x, y, params)
    out = jax.block_until_ready(out)

    ref = dpg_head_reference(x, y, params)
    np.testing.assert_allclose(np.asarray(out), np.asarray(ref),
                               rtol=1e-4, atol=1e-4)
    print("KERNEL_OK")
</pallas_src>

<mosaic_0001>
module attributes {stable_mosaic.version = 11 : i64} {
  func.func @_context_kernel(%arg0: i32, %arg1: i32, %arg2: memref<1x4x256xf32, #tpu.memory_space<vmem>>, %arg3: memref<1x4xf32, #tpu.memory_space<vmem>>, %arg4: memref<1x1xf32, #tpu.memory_space<smem>>, %arg5: memref<1x4x1xf32, #tpu.memory_space<vmem>>, %arg6: memref<1x1xf32, #tpu.memory_space<vmem>>, %arg7: memref<1x1xf32, #tpu.memory_space<vmem>>) attributes {dimension_semantics = [#tpu.dimension_semantics<parallel>, #tpu.dimension_semantics<arbitrary>], iteration_bounds = array<i64: 2, 1>, scalar_prefetch = 0 : i64, scratch_operands = 2 : i64, tpu.core_type = #tpu.core_type<tc>, window_params = [{transform_indices = @transform_0, window_bounds = array<i64: 1, 4, 256>}, {pipeline_mode = #tpu.pipeline_mode<synchronous>, transform_indices = @transform_1, window_bounds = array<i64: 1, 4>}, {transform_indices = @transform_2, window_bounds = array<i64: 1, 1>}, {transform_indices = @transform_3, window_bounds = array<i64: 1, 4, 1>}]} {
    %c0_i32 = arith.constant 0 : i32
    %0 = arith.cmpi eq, %arg1, %c0_i32 : i32
    %1 = arith.extui %0 : i1 to i32
    %c0_i32_0 = arith.constant 0 : i32
    %2 = arith.cmpi ne, %1, %c0_i32_0 : i32
    scf.if %2 {
      %cst_26 = arith.constant 0xFF800000 : f32
      %38 = vector.broadcast %cst_26 : f32 to vector<1x1xf32>
      %c0_27 = arith.constant 0 : index
      %c0_28 = arith.constant 0 : index
      %39 = vector.load %arg6[%c0_27, %c0_28] : memref<1x1xf32, #tpu.memory_space<vmem>>, vector<1x1xf32>
      tpu.vector_store %arg6[%c0_27, %c0_28], %38 {strides = array<i32>} : memref<1x1xf32, #tpu.memory_space<vmem>>, vector<1x1xf32>,
      %cst_29 = arith.constant 0.000000e+00 : f32
      %40 = vector.broadcast %cst_29 : f32 to vector<1x1xf32>
      %c0_30 = arith.constant 0 : index
      %c0_31 = arith.constant 0 : index
      %41 = vector.load %arg7[%c0_30, %c0_31] : memref<1x1xf32, #tpu.memory_space<vmem>>, vector<1x1xf32>
      tpu.vector_store %arg7[%c0_30, %c0_31], %40 {strides = array<i32>} : memref<1x1xf32, #tpu.memory_space<vmem>>, vector<1x1xf32>,
      %cst_32 = arith.constant 0.000000e+00 : f32
      %42 = vector.broadcast %cst_32 : f32 to vector<1x4x1xf32>
      %c0_33 = arith.constant 0 : index
      %c0_34 = arith.constant 0 : index
      %c0_35 = arith.constant 0 : index
      %43 = vector.load %arg5[%c0_33, %c0_34, %c0_35] : memref<1x4x1xf32, #tpu.memory_space<vmem>>, vector<1x4x1xf32>
      tpu.vector_store %arg5[%c0_33, %c0_34, %c0_35], %42 {strides = array<i32>} : memref<1x4x1xf32, #tpu.memory_space<vmem>>, vector<1x4x1xf32>,
    } else {
    }
    %c0 = arith.constant 0 : index
    %c0_1 = arith.constant 0 : index
    %c0_2 = arith.constant 0 : index
    %3 = vector.load %arg2[%c0, %c0_1, %c0_2] : memref<1x4x256xf32, #tpu.memory_space<vmem>>, vector<1x4x256xf32>
    %4 = vector.shape_cast %3 : vector<1x4x256xf32> to vector<4x256xf32>
    %c0_3 = arith.constant 0 : index
    %c0_4 = arith.constant 0 : index
    %5 = vector.load %arg3[%c0_3, %c0_4] : memref<1x4xf32, #tpu.memory_space<vmem>>, vector<1x4xf32>
    %cst = arith.constant dense<0.000000e+00> : vector<1x256xf32>
    %6 = tpu.matmul %5, %4, %cst {dimension_numbers = #tpu.dot_dimension_numbers<[1], [0], [0], [1], [0, 0, 1, 1], [], []>} : vector<1x4xf32>, vector<4x256xf32>, vector<1x256xf32> -> vector<1x256xf32>
    %c0_5 = arith.constant 0 : index
    %c0_6 = arith.constant 0 : index
    %7 = memref.load %arg4[%c0_5, %c0_6] : memref<1x1xf32, #tpu.memory_space<smem>>
    %8 = vector.broadcast %7 : f32 to vector<1x256xf32>
    %9 = arith.addf %6, %8 : vector<1x256xf32>
    %c0_7 = arith.constant 0 : index
    %c0_8 = arith.constant 0 : index
    %10 = vector.load %arg6[%c0_7, %c0_8] : memref<1x1xf32, #tpu.memory_space<vmem>>, vector<1x1xf32>
    %cst_9 = arith.constant dense<0xFF800000> : vector<1xf32>
    %11 = vector.multi_reduction <maximumf>, %9, %cst_9 [1] : vector<1x256xf32> to vector<1xf32>
    %12 = vector.shape_cast %11 : vector<1xf32> to vector<1x1xf32>
    %13 = arith.maximumf %10, %12 : vector<1x1xf32>
    %14 = arith.subf %10, %13 : vector<1x1xf32>
    %15 = math.exp %14 : vector<1x1xf32>
    %16 = vector.broadcast %13 : vector<1x1xf32> to vector<1x256xf32>
    %17 = arith.subf %9, %16 : vector<1x256xf32>
    %18 = math.exp %17 : vector<1x256xf32>
    %c0_10 = arith.constant 0 : index
    %c0_11 = arith.constant 0 : index
    %19 = vector.load %arg7[%c0_10, %c0_11] : memref<1x1xf32, #tpu.memory_space<vmem>>, vector<1x1xf32>
    %20 = arith.mulf %19, %15 : vector<1x1xf32>
    %cst_12 = arith.constant dense<0.000000e+00> : vector<1xf32>
    %21 = vector.multi_reduction <add>, %18, %cst_12 [1] : vector<1x256xf32> to vector<1xf32>
    %22 = vector.shape_cast %21 : vector<1xf32> to vector<1x1xf32>
    %23 = arith.addf %20, %22 : vector<1x1xf32>
    %c0_13 = arith.constant 0 : index
    %c0_14 = arith.constant 0 : index
    %24 = vector.load %arg7[%c0_13, %c0_14] : memref<1x1xf32, #tpu.memory_space<vmem>>, vector<1x1xf32>
    tpu.vector_store %arg7[%c0_13, %c0_14], %23 {strides = array<i32>} : memref<1x1xf32, #tpu.memory_space<vmem>>, vector<1x1xf32>,
    %cst_15 = arith.constant dense<0.000000e+00> : vector<4x1xf32>
    %25 = tpu.matmul %4, %18, %cst_15 {dimension_numbers = #tpu.dot_dimension_numbers<[1], [1], [0], [0], [0, 0, 1, 0], [], []>} : vector<4x256xf32>, vector<1x256xf32>, vector<4x1xf32> -> vector<4x1xf32>
    %c0_16 = arith.constant 0 : index
    %c0_17 = arith.constant 0 : index
    %c0_18 = arith.constant 0 : index
    %26 = vector.load %arg5[%c0_16, %c0_17, %c0_18] : memref<1x4x1xf32, #tpu.memory_space<vmem>>, vector<1x4x1xf32>
    %27 = vector.shape_cast %26 : vector<1x4x1xf32> to vector<4x1xf32>
    %28 = vector.broadcast %15 : vector<1x1xf32> to vector<4x1xf32>
    %29 = arith.mulf %27, %28 : vector<4x1xf32>
    %30 = arith.addf %29, %25 : vector<4x1xf32>
    %c0_19 = arith.constant 0 : index
    %c0_20 = arith.constant 0 : index
    %c0_21 = arith.constant 0 : index
    %31 = vector.load %arg5[%c0_19, %c0_20, %c0_21] : memref<1x4x1xf32, #tpu.memory_space<vmem>>, vector<1x4x1xf32>
    %32 = vector.shape_cast %31 : vector<1x4x1xf32> to vector<4x1xf32>
    %33 = vector.shape_cast %30 : vector<4x1xf32> to vector<1x4x1xf32>
    tpu.vector_store %arg5[%c0_19, %c0_20, %c0_21], %33 {strides = array<i32>} : memref<1x4x1xf32, #tpu.memory_space<vmem>>, vector<1x4x1xf32>,
    %c0_22 = arith.constant 0 : index
    %c0_23 = arith.constant 0 : index
    %34 = vector.load %arg6[%c0_22, %c0_23] : memref<1x1xf32, #tpu.memory_space<vmem>>, vector<1x1xf32>
    tpu.vector_store %arg6[%c0_22, %c0_23], %13 {strides = array<i32>} : memref<1x1xf32, #tpu.memory_space<vmem>>, vector<1x1xf32>,
    %c0_i32_24 = arith.constant 0 : i32
    %35 = arith.cmpi eq, %arg1, %c0_i32_24 : i32
    %36 = arith.extui %35 : i1 to i32
    %c0_i32_25 = arith.constant 0 : i32
    %37 = arith.cmpi ne, %36, %c0_i32_25 : i32
    scf.if %37 {
      %c0_26 = arith.constant 0 : index
      %c0_27 = arith.constant 0 : index
      %c0_28 = arith.constant 0 : index
      %38 = vector.load %arg5[%c0_26, %c0_27, %c0_28] : memref<1x4x1xf32, #tpu.memory_space<vmem>>, vector<1x4x1xf32>
      %39 = vector.shape_cast %38 : vector<1x4x1xf32> to vector<4x1xf32>
      %c0_29 = arith.constant 0 : index
      %c0_30 = arith.constant 0 : index
      %40 = vector.load %arg7[%c0_29, %c0_30] : memref<1x1xf32, #tpu.memory_space<vmem>>, vector<1x1xf32>
      %41 = tpu.reciprocal %40 : vector<1x1xf32> -> vector<1x1xf32>
      %42 = vector.broadcast %41 : vector<1x1xf32> to vector<4x1xf32>
      %43 = arith.mulf %39, %42 : vector<4x1xf32>
      %c0_31 = arith.constant 0 : index
      %c0_32 = arith.constant 0 : index
      %c0_33 = arith.constant 0 : index
      %44 = vector.load %arg5[%c0_31, %c0_32, %c0_33] : memref<1x4x1xf32, #tpu.memory_space<vmem>>, vector<1x4x1xf32>
      %45 = vector.shape_cast %44 : vector<1x4x1xf32> to vector<4x1xf32>
      %46 = vector.shape_cast %43 : vector<4x1xf32> to vector<1x4x1xf32>
      tpu.vector_store %arg5[%c0_31, %c0_32, %c0_33], %46 {strides = array<i32>} : memref<1x4x1xf32, #tpu.memory_space<vmem>>, vector<1x4x1xf32>,
    } else {
    }
    return
  }
  func.func @transform_0(%arg0: i32, %arg1: i32) -> (i32, i32, i32) {
    %c0_i32 = arith.constant 0 : i32
    %c0_i32_0 = arith.constant 0 : i32
    return %arg0, %c0_i32, %arg1 : i32, i32, i32
  }
  func.func @transform_1(%arg0: i32, %arg1: i32) -> (i32, i32) {
    %c0_i32 = arith.constant 0 : i32
    %c0_i32_0 = arith.constant 0 : i32
    %c0_i32_1 = arith.constant 0 : i32
    return %c0_i32, %c0_i32_0 : i32, i32
  }
  func.func @transform_2(%arg0: i32, %arg1: i32) -> (i32, i32) {
    %c0_i32 = arith.constant 0 : i32
    %c0_i32_0 = arith.constant 0 : i32
    %c0_i32_1 = arith.constant 0 : i32
    return %c0_i32, %c0_i32_0 : i32, i32
  }
  func.func @transform_3(%arg0: i32, %arg1: i32) -> (i32, i32, i32) {
    %c0_i32 = arith.constant 0 : i32
    %c0_i32_0 = arith.constant 0 : i32
    %c0_i32_1 = arith.constant 0 : i32
    return %arg0, %c0_i32, %c0_i32_0 : i32, i32, i32
  }
}

</mosaic_0001>

<llo_original>
// kernel: tpu_custom_call.1
$region0: #{tpu_custom_call.1}
  #allocation0 [shape = 'u32[]', space=smem, size = 0x4, offset = 0x4, fixed_abs, tag = 'smem constant byte address 0x4 - core index']
  #allocation1 [shape = 'u32[72,128]{1,0:T(1,128)}', space=vmem, size = 0x9000, scoped, tag = 'internal scratch']
  #allocation2 [shape = 'f32[1,1]{1,0:T(1,128)}', space=vmem, size = 0x200, scoped, tag = 'scratch operand']
  #allocation3 [shape = 'f32[1,1]{1,0:T(1,128)}', space=vmem, size = 0x200, scoped, tag = 'scratch operand']
  #allocation4 [shape = 'f32[1,1]{1,0:T(1,128)S(6)}', space=smem, size = 0x200, scoped, tag = 'scoped memory for tpu_custom_call.1']
  %s0 = inlined_call_operand.hbm [shape: f32[2,4,256], index: 0, kind: input, shape index: {}]
  %s1 = inlined_call_operand.vmem [shape: f32[1,4], index: 1, kind: input, shape index: {}]
  %s2 = inlined_call_operand.<no memory space> [shape: f32[1,1], index: 2, kind: input, shape index: {}]
  %s3 = inlined_call_operand.vmem [shape: f32[2,4,1], index: 3, kind: output, shape index: {}]
  %s4 = sld [smem:[#allocation0]]
  $region57: #{tpu_custom_call.1} parent=0
    _
  %s6 = ssub.s32 1, %s4
  %s7 = scalar_select 0, %s6, %s4
  %8 = sst [smem:[#allocation4]] %s2
  $region1: #{tpu_custom_call.1} parent=0
    #allocation5 [shape = 'u8[8192]{0}', space=vmem, size = 0x2000, scoped, tag = 'input window, operand 0']
    #allocation6 [shape = 's32[2]{0}', space=sflag, size = 0x8, scoped, tag = 'scoped memory for tpu_custom_call.1']
    %9 = vsyncpa [#allocation6], 0
    %s10 = scalar_lea.sflag [#allocation6], 1
    %11 = vsyncpa %s10, 0
    loop: start=0, step=1, limit=4
    $region2: #{tpu_custom_call.1} parent=1 // loop_pre_header
      _
    $region3: #{tpu_custom_call.1} parent=1 // loop_header
      %s13 = sphi 0, %s17
      %p14 = scmp.ge.s32.totalorder %s13, 4
      %s20 = sphi 0, %s32
      %s21 = sphi 0, %s28
      %s22 = sphi 0, %s20
      %s23 = sphi 0, %s21
      %s24 = sphi 0, %s22
      %s25 = sphi 0, %s23
      %s37 = sphi 0, %s39
      %s40 = sphi 0, %s37
      %s41 = sphi 0, %s40
      %s57 = sphi 0, %s41
      %s61 = sphi 0, %s61
      %s63 = sphi 0, %s61
      %s64 = sphi 0, %s63
      %s78 = sphi 0, %s64
      %s82 = sphi 0, %s82
      %s84 = sphi 0, %s82
      %s85 = sphi 0, %s84
      %s99 = sphi 0, %s85
      %s105 = sphi 0, %s107
      %s108 = sphi 0, %s105
      %s109 = sphi 0, %s108
      %s125 = sphi 0, %s109
    $region4: #{tpu_custom_call.1} parent=1 // loop_header_branch
      %16 = sbr.rel (%p14) target = $region8
    $region5: #{tpu_custom_call.1} parent=1 // loop_body
      %s18 = ssub.s32 %s13, 1
      %s19 = ssub.s32 %s13, 2
      %s26 = sadd.s32 1, %s21
      %p27 = scmp.ge.s32.totalorder %s26, 1
      %s28 = scalar_select %p27, 0, %s26
      %s29 = sadd.s32 1, %s20
      %s30 = scalar_select %p27, %s29, %s20
      %p31 = scmp.ge.s32.totalorder %s30, 2
      %s32 = scalar_select %p31, 0, %s30
      %s33 = ssub.s32 %s20, %s32
      %s34 = ssub.s32 %s21, %s28
      %s35 = sor.u32 %s33, %s34
      %p36 = scmp.eq.s32.totalorder %s35, 0
      %s38 = sadd.s32 %s37, 1
      %s39 = scalar_select %p36, %s37, %s38
      %p42 = pneg %p36
      %p43 = scmp.eq.s32.totalorder %s13, 1
      %p44 = por %p42, %p43
      %p45 = scmp.ne.s32.totalorder %s37, %s40
      %p46 = scmp.eq.s32.totalorder %s13, 0
      %p47 = por %p45, %p46
      %p48 = scmp.ne.s32.totalorder %s37, %s40
      %p49 = scmp.eq.s32.totalorder %s18, 1
      %p50 = por %p48, %p49
      %p51 = scmp.ne.s32.totalorder %s40, %s41
      %p52 = scmp.eq.s32.totalorder %s18, 0
      %p53 = por %p51, %p52
      %p54 = scmp.ne.s32.totalorder %s40, %s41
      %p55 = scmp.eq.s32.totalorder %s19, 1
      %p56 = por %p54, %p55
      %p58 = scmp.ne.s32.totalorder %s41, %s57
      %p59 = scmp.eq.s32.totalorder %s19, 0
      %p60 = por %p58, %p59
      %s62 = sadd.s32 %s61, 1
      %p65 = scmp.eq.s32.totalorder %s13, 1
      %p66 = scmp.ne.s32.totalorder %s61, %s63
      %p67 = scmp.eq.s32.totalorder %s13, 0
      %p68 = por %p66, %p67
      %p69 = scmp.ne.s32.totalorder %s61, %s63
      %p70 = scmp.eq.s32.totalorder %s18, 1
      %p71 = por %p69, %p70
      %p72 = scmp.ne.s32.totalorder %s63, %s64
      %p73 = scmp.eq.s32.totalorder %s18, 0
      %p74 = por %p72, %p73
      %p75 = scmp.ne.s32.totalorder %s63, %s64
      %p76 = scmp.eq.s32.totalorder %s19, 1
      %p77 = por %p75, %p76
      %p79 = scmp.ne.s32.totalorder %s64, %s78
      %p80 = scmp.eq.s32.totalorder %s19, 0
      %p81 = por %p79, %p80
      %s83 = sadd.s32 %s82, 1
      %p86 = scmp.eq.s32.totalorder %s13, 1
      %p87 = scmp.ne.s32.totalorder %s82, %s84
      %p88 = scmp.eq.s32.totalorder %s13, 0
      %p89 = por %p87, %p88
      %p90 = scmp.ne.s32.totalorder %s82, %s84
      %p91 = scmp.eq.s32.totalorder %s18, 1
      %p92 = por %p90, %p91
      %p93 = scmp.ne.s32.totalorder %s84, %s85
      %p94 = scmp.eq.s32.totalorder %s18, 0
      %p95 = por %p93, %p94
      %p96 = scmp.ne.s32.totalorder %s84, %s85
      %p97 = scmp.eq.s32.totalorder %s19, 1
      %p98 = por %p96, %p97
      %p100 = scmp.ne.s32.totalorder %s85, %s99
      %p101 = scmp.eq.s32.totalorder %s19, 0
      %p102 = por %p100, %p101
      %s103 = ssub.s32 %s20, %s32
      %p104 = scmp.eq.s32.totalorder %s103, 0
      %s106 = sadd.s32 %s105, 1
      %s107 = scalar_select %p104, %s105, %s106
      %p110 = pneg %p104
      %p111 = scmp.eq.s32.totalorder %s13, 1
      %p112 = por %p110, %p111
      %p113 = scmp.ne.s32.totalorder %s105, %s108
      %p114 = scmp.eq.s32.totalorder %s13, 0
      %p115 = por %p113, %p114
      %p116 = scmp.ne.s32.totalorder %s105, %s108
      %p117 = scmp.eq.s32.totalorder %s18, 1
      %p118 = por %p116, %p117
      %p119 = scmp.ne.s32.totalorder %s108, %s109
      %p120 = scmp.eq.s32.totalorder %s18, 0
      %p121 = por %p119, %p120
      %p122 = scmp.ne.s32.totalorder %s108, %s109
      %p123 = scmp.eq.s32.totalorder %s19, 1
      %p124 = por %p122, %p123
      %p126 = scmp.ne.s32.totalorder %s109, %s125
      %p127 = scmp.eq.s32.totalorder %s19, 0
      %p128 = por %p126, %p127
      %p129 = scmp.le.s32.totalorder 1, %s13
      %p130 = scmp.lt.s32.totalorder %s13, 3
      %p131 = pnand %p129, %p130
      %p132 = pneg %p131
      // Predicated region
      $region9: #{tpu_custom_call.1} parent=5 // pred_check
        _
      $region10: #{tpu_custom_call.1} parent=5 // pred_check_branch
        %134 = sbr.rel (%p131) target = $region12
      $region11: #{tpu_custom_call.1} parent=5 // pred_region
        %s135 = ssub.s32 %s13, 1
        // Predicated region
        $region13: #{tpu_custom_call.1} parent=11 // pred_check
          %p136 = pneg %p74
        $region14: #{tpu_custom_call.1} parent=11 // pred_check_branch
          %138 = sbr.rel (%p136) target = $region16
        $region15: #{tpu_custom_call.1} parent=11 // pred_region
          _
        $region16: #{tpu_custom_call.1} parent=11 // pred_fallthru
          _
        // Predicated region
        $region17: #{tpu_custom_call.1} parent=11 // pred_check
          %p139 = pneg %p95
        $region18: #{tpu_custom_call.1} parent=11 // pred_check_branch
          %141 = sbr.rel (%p139) target = $region20
        $region19: #{tpu_custom_call.1} parent=11 // pred_region
          _
        $region20: #{tpu_custom_call.1} parent=11 // pred_fallthru
          _
      $region12: #{tpu_custom_call.1} parent=5 // pred_fallthru
        _
      %p142 = scmp.lt.s32.totalorder %s13, 2
      // Predicated region
      $region21: #{tpu_custom_call.1} parent=5 // pred_check
        %p143 = pneg %p142
      $region22: #{tpu_custom_call.1} parent=5 // pred_check_branch
        %145 = sbr.rel (%p143) target = $region24
      $region23: #{tpu_custom_call.1} parent=5 // pred_region
        // Predicated region
        $region25: #{tpu_custom_call.1} parent=23 // pred_check
          %p146 = pneg %p47
        $region26: #{tpu_custom_call.1} parent=23 // pred_check_branch
          %148 = sbr.rel (%p146) target = $region28
        $region27: #{tpu_custom_call.1} parent=23 // pred_region
          %s149 = sand.u32 %s37, 1
          %s150 = scalar_lea.sflag [#allocation6], %s149
          %s151 = sand.u32 %s37, 1
          %s152 = smul.addr %s151, 8
          %s153 = scalar_lea.vmem [#allocation5], %s152
          %s154 = smul.u32 2, %s21
          %156 = vsyncadd %s150, 0
          %s157 = smul.addr %s20, 2
          %s158 = sadd.s32 %s154, %s157
          %s159 = smul.addr %s158, 4
          %s160 = scalar_lea.hbm %s0, %s159
          %s162 = sshll.u32 %s160, 4
          %s163 = int_to_ptr.hbm [resolvable:$true] %s162
          %s164 = sshll.u32 %s153, 4
          %s165 = int_to_ptr.vmem [resolvable:$true] %s164
          %167 = dma.hbm_to_vmem [thread:$0]  %s163, 128, %s165, %s150
        $region28: #{tpu_custom_call.1} parent=23 // pred_fallthru
          _
      $region24: #{tpu_custom_call.1} parent=5 // pred_fallthru
        _
      %p168 = scmp.le.s32.totalorder 1, %s13
      %p169 = scmp.lt.s32.totalorder %s13, 3
      %p170 = pnand %p168, %p169
      %p171 = pneg %p170
      // Predicated region
      $region29: #{tpu_custom_call.1} parent=5 // pred_check
        _
      $region30: #{tpu_custom_call.1} parent=5 // pred_check_branch
        %173 = sbr.rel (%p170) target = $region32
      $region31: #{tpu_custom_call.1} parent=5 // pred_region
        %s174 = ssub.s32 %s13, 1
        %s175 = sand.u32 %s40, 1
        %s176 = scalar_lea.sflag [#allocation6], %s175
        %s177 = sand.u32 %s40, 1
        %s178 = smul.addr %s177, 8
        %s179 = scalar_lea.vmem [#allocation5], %s178
        // Predicated region
        $region33: #{tpu_custom_call.1} parent=31 // pred_check
          %p180 = pneg %p53
        $region34: #{tpu_custom_call.1} parent=31 // pred_check_branch
          %182 = sbr.rel (%p180) target = $region36
        $region35: #{tpu_custom_call.1} parent=31 // pred_region
          %184 = dma.done %s176, 128
        $region36: #{tpu_custom_call.1} parent=31 // pred_fallthru
          _
        %s185 = sand.u32 %s40, 1
        %s186 = scalar_lea.sflag [#allocation6], %s185
        %s187 = sand.u32 %s40, 1
        %s188 = smul.addr %s187, 8
        %s189 = scalar_lea.vmem [#allocation5], %s188
        %p190 = pneg %p53
        %p191 = pneg %p50
        %p192 = pneg %p74
        %p193 = pneg %p71
        %p194 = pneg %p95
        %p195 = pneg %p92
        %p196 = pneg %p121
        %p197 = pneg %p118
        %p198 = scmp.lt.s32.totalorder %s22, 1
        %s199 = scalar_select %p198, %s22, 1
        %s200 = smul.addr %s199, 4
        %s201 = scalar_lea.vmem %s3, %s200
        %s202 = smul.u32 2, %s23
        %p203 = scmp.lt.s32.totalorder %s22, 1
        %s204 = scalar_select %p203, %s22, 1
        %s205 = smul.addr %s204, 4
        %s206 = scalar_lea.vmem %s3, %s205
        %p207 = scmp.eq.s32.totalorder %s23, 0
        // Predicated region
        $region37: #{tpu_custom_call.1} parent=31 // pred_check
          %p208 = pneg %p207
        $region38: #{tpu_custom_call.1} parent=31 // pred_check_branch
          %210 = sbr.rel (%p208) target = $region40
        $region39: #{tpu_custom_call.1} parent=31 // pred_region
          %vm211 = vcmask 0
          %212 = vst.msk [vmem:[#allocation2] sm:$0x1] %vm211, -inf
          %213 = vst.msk [vmem:[#allocation3] sm:$0x1] %vm211, 0.0
          %vm214 = vcmask 3072
          %215 = vst.msk [vmem:[%s206] sm:$0xf] %vm214, 0.0
        $region40: #{tpu_custom_call.1} parent=31 // pred_fallthru
          _
        %v216 = vld [vmem:[%s179] sm:$0xff]
        %v217 = vld [vmem:[%s1] sm:$0x1]
        %s218 = sld [smem:[#allocation4]]
        %v219 = vstv %s218
        %221 = vst [vmem:[#allocation1] ss:$2 sm:$0xff] %v216
        %v222 = vld.sshfl [vmem:[#allocation1] sm:$0xff pattern:$0x75316420]
        %v223 = vld.sshfl [vmem:[#allocation1 + $0x8] sm:$0xff pattern:$0x75316420]
        %vm224 = vcmask 31744
        %v226 = vsel %vm224, %v217, 0
        %vm228 = vcmask 1043456
        %v229 = vsel %vm228, %v222, 0
        %v231 = vsel %vm228, %v223, 0
        %233 = vmatpush.msra.mxu0 0.0
        %234 = vmatpush.msra.mxu0 0.0
        %235 = vmatpush.msra.mxu0 0.0
        %236 = vmatpush.msra.mxu0 0.0
        %237 = vmatpush.msra.mxu0 0.0
        %238 = vmatpush.msra.mxu0 0.0
        %239 = vmatpush.msra.mxu0 0.0
        %240 = vmatpush.msra.mxu0 0.0
        %241 = vmatpush.msra.mxu0 0.0
        %242 = vmatpush.msra.mxu0 0.0
        %243 = vmatpush.msra.mxu0 0.0
        %244 = vmatpush.msra.mxu0 0.0
        %245 = vmatpush.msra.mxu0 0.0
        %246 = vmatpush.msra.mxu0 0.0
        %247 = vmatpush.msra.mxu0 0.0
        %248 = vmatpush.msra.mxu0 %v229
        %249 = vmatmul.f32.gmra.mxu0 %v226
        %v250 = vpop.f32.mrf.mxu0
        %v251 = vadd.f32 %v219, %v250
        %252 = vdwg.mxu0
        %253 = vmatpush.msra.mxu0 0.0
        %254 = vmatpush.msra.mxu0 0.0
        %255 = vmatpush.msra.mxu0 0.0
        %256 = vmatpush.msra.mxu0 0.0
        %257 = vmatpush.msra.mxu0 0.0
        %258 = vmatpush.msra.mxu0 0.0
        %259 = vmatpush.msra.mxu0 0.0
        %260 = vmatpush.msra.mxu0 0.0
        %261 = vmatpush.msra.mxu0 0.0
        %262 = vmatpush.msra.mxu0 0.0
        %263 = vmatpush.msra.mxu0 0.0
        %264 = vmatpush.msra.mxu0 0.0
        %265 = vmatpush.msra.mxu0 0.0
        %266 = vmatpush.msra.mxu0 0.0
        %267 = vmatpush.msra.mxu0 0.0
        %268 = vmatpush.msra.mxu0 %v231
        %269 = vmatmul.f32.gmra.mxu0 %v226
        %v270 = vpop.f32.mrf.mxu0
        %v271 = vadd.f32 %v219, %v270
        %272 = vdwg.mxu0
        %v273 = vld [vmem:[#allocation2] sm:$0x1]
        %vm274 = vcmask 1040384
        %v275 = vsel %vm274, %v251, -inf
        %v276 = vsel %vm274, %v271, -inf
        %v277 = vmax.f32 %v275, %v276
        %278 = vmax.xlane.f32.xlu0 %v277
        %v279 = vpop.xlane.xlu0 %278
        %v280 = vmax.f32 %v273, %v279
        %v281 = vsub.f32 %v273, %v280
        %v282 = vmul.f32 %v281, 1.442695
        %v283 = vpow.pop %v282
        %285 = vset.pattern.permute.xlu0 0
        %286 = vperm.xlu0 %285, %v280
        %v287 = vpop.permute.xlu0 %286
        %v289 = vperm.slane %v287, 0
        %v290 = vsub.f32 %v251, %v289
        %v291 = vsub.f32 %v271, %v289
        %v292 = vmul.f32 %v290, 1.442695
        %v293 = vpow.pop %v292
        %v294 = vmul.f32 %v291, 1.442695
        %v295 = vpow.pop %v294
        %v296 = vld [vmem:[#allocation3] sm:$0x1]
        %v297 = vmul.f32 %v296, %v283
        %v298 = vsel %vm274, %v293, 0.0
        %v299 = vsel %vm274, %v295, 0.0
        %v300 = vadd.f32 %v298, %v299
        %301 = vadd.xlane.f32.xlu0 %v300
        %v302 = vpop.xlane.xlu0 %301
        %v303 = vadd.f32 %v297, %v302
        %vm304 = vcmask 0
        %305 = vst.msk [vmem:[#allocation3] sm:$0x1] %vm304, %v303
        %v306 = vperm.slane %v293, 0
        %v307 = vperm.slane %v295, 0
        %v310 = vrot.slane %v307, 4
        %v311 = vsel %vm228, %v306, %v310
        %v313 = vmul.f32 %v216, %v311
        %315 = vst [vmem:[#allocation1] ss:$2 sm:$0xff] %v313
        %v316 = vld.sshfl [vmem:[#allocation1] sm:$0xff pattern:$0x75316420]
        %v317 = vld.sshfl [vmem:[#allocation1 + $0x8] sm:$0xff pattern:$0x75316420]
        %v320 = vsel %vm228, %v316, 0.0
        %v321 = vsel %vm228, %v317, 0.0
        %v322 = vadd.f32 %v320, %v321
        %323 = vadd.xlane.f32.xlu0 %v322
        %v324 = vpop.xlane.xlu0 %323
        %v325 = vld [vmem:[%s206] sm:$0xf]
        %v327 = vperm.slane %v283, 0
        %v329 = vmul.f32 %v325, %v327
        %v330 = vadd.f32 %v329, %v324
        %vm331 = vcmask 3072
        %332 = vst.msk [vmem:[%s206] sm:$0xf] %vm331, %v330
        %333 = vst.msk [vmem:[#allocation2] sm:$0x1] %vm304, %v280
        // Predicated region
        $region41: #{tpu_custom_call.1} parent=31 // pred_check
          %p334 = pneg %p207
        $region42: #{tpu_custom_call.1} parent=31 // pred_check_branch
          %336 = sbr.rel (%p334) target = $region44
        $region43: #{tpu_custom_call.1} parent=31 // pred_region
          %v337 = vld [vmem:[%s206] sm:$0xf]
          %v338 = vld [vmem:[#allocation3] sm:$0x1]
          %v339 = vrcp.pop %v338
          %v340 = vmul.f32 %v338, %v339
          %v341 = vsub.f32 1.0, %v340
          %v342 = vmul.f32 %v339, %v341
          %v343 = vadd.f32 %v339, %v342
          %vm344 = vweird.f32 %v338
          %vm345 = vweird.f32 %v339
          %vm346 = vmor %vm344, %vm345
          %v347 = vsel %vm346, %v339, %v343
          %v348 = vand.u32 2147483647, %v338
          %vm349 = vcmp.eq.f32.partialorder %v348, 8.507059e+37
          %v350 = vand.u32 %v338, 2147483648
          %v351 = vor.u32 1.1754944e-38, %v350
          %v352 = vsel %vm349, %v351, %v347
          %v354 = vperm.slane %v352, 0
          %v356 = vmul.f32 %v337, %v354
          %357 = vst.msk [vmem:[%s206] sm:$0xf] %vm331, %v356
        $region44: #{tpu_custom_call.1} parent=31 // pred_fallthru
          _
        %p358 = scmp.lt.s32.totalorder %s22, 1
        %s359 = scalar_select %p358, %s22, 1
        %s360 = smul.addr %s359, 4
        %s361 = scalar_lea.vmem %s3, %s360
        // Predicated region
        $region45: #{tpu_custom_call.1} parent=31 // pred_check
          %p362 = pneg %p118
        $region46: #{tpu_custom_call.1} parent=31 // pred_check_branch
          %364 = sbr.rel (%p362) target = $region48
        $region47: #{tpu_custom_call.1} parent=31 // pred_region
          _
        $region48: #{tpu_custom_call.1} parent=31 // pred_fallthru
          _
      $region32: #{tpu_custom_call.1} parent=5 // pred_fallthru
        _
      %p365 = scmp.le.s32.totalorder 2, %s13
      // Predicated region
      $region49: #{tpu_custom_call.1} parent=5 // pred_check
        %p366 = pneg %p365
      $region50: #{tpu_custom_call.1} parent=5 // pred_check_branch
        %368 = sbr.rel (%p366) target = $region52
      $region51: #{tpu_custom_call.1} parent=5 // pred_region
        %s369 = ssub.s32 %s13, 2
        // Predicated region
        $region53: #{tpu_custom_call.1} parent=51 // pred_check
          %p370 = pneg %p124
        $region54: #{tpu_custom_call.1} parent=51 // pred_check_branch
          %372 = sbr.rel (%p370) target = $region56
        $region55: #{tpu_custom_call.1} parent=51 // pred_region
          %p373 = scmp.lt.s32.totalorder %s24, 1
          %s374 = scalar_select %p373, %s24, 1
          %s375 = smul.addr %s374, 4
          %s376 = scalar_lea.vmem %s3, %s375
        $region56: #{tpu_custom_call.1} parent=51 // pred_fallthru
          _
      $region52: #{tpu_custom_call.1} parent=5 // pred_fallthru
        _
    $region6: #{tpu_custom_call.1} parent=1 // loop_footer
      %s17 = sadd.s32 1, %s13
    $region7: #{tpu_custom_call.1} parent=1 // loop_footer_branch
      %12 = sbr.rel target = $region3
    $region8: #{tpu_custom_call.1} parent=1 // loop_exit
      _
    %377 = vsyncpa [#allocation6], 1
    %s378 = scalar_lea.sflag [#allocation6], 1
    %379 = vsyncpa %s378, 1

</llo_original>
